<compile_context>
chip_gen: v7x
topology: tpu7x:2x2x1
jax: 0.10.0
libtpu: 0.0.40
codegen_flags: <defaults>
</compile_context>

<pallas_src>
import jax
import jax.numpy as jnp
from jax.experimental import pallas as pl
from jax.experimental.pallas import tpu as pltpu


def se_small_kernel(x_ref, wt_ref, o_ref):
    # x_ref: (TN, C)   wt_ref: (C, C) == W^T (grid-invariant)   o_ref: (TN, C)
    x = x_ref[...]                                                   # native dtype
    # fc: Linear(channel, channel, bias=False) -> y = x @ W^T on the MXU, f32 accum.
    # No .astype on the operands: MXU consumes bf16/f32 natively, and the weight block
    # is grid-invariant so a per-step cast would be pure wasted VPU work.
    y = jnp.dot(x, wt_ref[...], preferred_element_type=jnp.float32)  # (TN, C) f32
    # Hsigmoid (spec): relu6(y + 3) / 3   (pure VPU, no transcendentals)
    gate = jnp.clip(y + 3.0, 0.0, 6.0) * (1.0 / 3.0)                 # (TN, C) f32
    # SE gating: out = x * gate, fused on the already-resident x tile.
    o_ref[...] = (x.astype(jnp.float32) * gate).astype(o_ref.dtype)


def se_module_small(x, w_t, *, tn=512):
    """Fused SEModule_small forward.

    x:   (N, C) activations (nn.Linear acts on the last dim).
    w_t: (C, C) = W.T where W is the PyTorch nn.Linear weight (out_features,
         in_features).  Pre-transpose (and optionally cast to bf16) once, outside
         the hot path.
    tn:  batch rows per grid step.  Large tiles (512-4096) put the kernel near the
         HBM roofline; it is clamped for small N.  For best store throughput keep
         C a multiple of 128 (lane-dense output); non-multiples still lower because
         the block spans the full channel dim.
    """
    N, C = x.shape
    assert w_t.shape == (C, C), w_t.shape
    # Clamp tn for small N; keep it a sublane multiple (8).
    tn = max(8, min(tn, ((N + 7) // 8) * 8))

    grid = (pl.cdiv(N, tn),)
    return pl.pallas_call(
        se_small_kernel,
        out_shape=jax.ShapeDtypeStruct((N, C), x.dtype),
        grid_spec=pltpu.PrefetchScalarGridSpec(
            num_scalar_prefetch=0,
            grid=grid,
            in_specs=[
                # Batch-blocked x tile: tn sublane-dense rows x full C lanes.
                pl.BlockSpec((tn, C), lambda i: (i, 0)),
                # Weight is grid-invariant (constant index_map) -> DMA'd once per pass.
                pl.BlockSpec((C, C), lambda i: (0, 0)),
            ],
            out_specs=pl.BlockSpec((tn, C), lambda i: (i, 0)),
        ),
        compiler_params=pltpu.CompilerParams(
            # Independent batch axis -> shards across both TensorCores on v7x.
            dimension_semantics=("parallel",),
        ),
    )(x, w_t)


def se_module_small_ref(x, w):
    # Pure-JAX reference of the PyTorch forward (w in PyTorch (out, in) layout).
    y = x @ w.T                                   # Linear, bias=False
    gate = jnp.clip(y + 3.0, 0.0, 6.0) / 3.0      # Hsigmoid = relu6(y+3)/3 (per spec)
    return x * gate


if __name__ == "__main__":
    # Small shapes consistent with the module: 40 samples, 128 channels.
    # tn=16 -> grid=(3,), last block partial, exercising multi-step pipelining and
    # the masked final store.  (Production: leave tn at its large default.)
    N, C = 40, 128

    key = jax.random.PRNGKey(0)
    kx, kw = jax.random.split(key, 2)
    x = jax.random.normal(kx, (N, C), dtype=jnp.float32)
    w = jax.random.normal(kw, (C, C), dtype=jnp.float32) * 0.1  # nn.Linear(C, C, bias=False)

    # One-time weight transpose outside the hot path (cache / const-fold in real use).
    w_t = jnp.asarray(w).T

    out = se_module_small(x, w_t, tn=16)
    out = jax.block_until_ready(out)

    ref = se_module_small_ref(x, w)
    assert out.shape == (N, C), out.shape
    assert jnp.allclose(out, ref, atol=1e-5, rtol=1e-5), "mismatch vs reference"

    print("KERNEL_OK")
</pallas_src>

<mosaic_0001>
module attributes {stable_mosaic.version = 11 : i64} {
  func.func @se_small_kernel(%arg0: i32, %arg1: memref<16x128xf32, #tpu.memory_space<vmem>>, %arg2: memref<128x128xf32, #tpu.memory_space<vmem>>, %arg3: memref<16x128xf32, #tpu.memory_space<vmem>>) attributes {dimension_semantics = [#tpu.dimension_semantics<parallel>], iteration_bounds = array<i64: 3>, scalar_prefetch = 0 : i64, scratch_operands = 0 : i64, tpu.core_type = #tpu.core_type<tc>, window_params = [{transform_indices = @transform_0, window_bounds = array<i64: 16, 128>}, {pipeline_mode = #tpu.pipeline_mode<synchronous>, transform_indices = @transform_1, window_bounds = array<i64: 128, 128>}, {transform_indices = @transform_2, window_bounds = array<i64: 16, 128>}]} {
    %c0 = arith.constant 0 : index
    %c0_0 = arith.constant 0 : index
    %0 = vector.load %arg1[%c0, %c0_0] : memref<16x128xf32, #tpu.memory_space<vmem>>, vector<16x128xf32>
    %c0_1 = arith.constant 0 : index
    %c0_2 = arith.constant 0 : index
    %1 = vector.load %arg2[%c0_1, %c0_2] : memref<128x128xf32, #tpu.memory_space<vmem>>, vector<128x128xf32>
    %cst = arith.constant dense<0.000000e+00> : vector<16x128xf32>
    %2 = tpu.matmul %0, %1, %cst {dimension_numbers = #tpu.dot_dimension_numbers<[1], [0], [0], [1], [0, 0, 1, 1], [], []>} : vector<16x128xf32>, vector<128x128xf32>, vector<16x128xf32> -> vector<16x128xf32>
    %cst_3 = arith.constant 3.000000e+00 : f32
    %3 = vector.broadcast %cst_3 : f32 to vector<16x128xf32>
    %4 = arith.addf %2, %3 : vector<16x128xf32>
    %cst_4 = arith.constant 0.000000e+00 : f32
    %cst_5 = arith.constant 6.000000e+00 : f32
    %5 = vector.broadcast %cst_4 : f32 to vector<16x128xf32>
    %6 = arith.maximumf %5, %4 : vector<16x128xf32>
    %7 = vector.broadcast %cst_5 : f32 to vector<16x128xf32>
    %8 = arith.minimumf %7, %6 : vector<16x128xf32>
    %cst_6 = arith.constant 0.333333343 : f32
    %9 = vector.broadcast %cst_6 : f32 to vector<16x128xf32>
    %10 = arith.mulf %8, %9 : vector<16x128xf32>
    %11 = arith.mulf %0, %10 : vector<16x128xf32>
    %c0_7 = arith.constant 0 : index
    %c0_8 = arith.constant 0 : index
    %12 = vector.load %arg3[%c0_7, %c0_8] : memref<16x128xf32, #tpu.memory_space<vmem>>, vector<16x128xf32>
    tpu.vector_store %arg3[%c0_7, %c0_8], %11 {strides = array<i32>} : memref<16x128xf32, #tpu.memory_space<vmem>>, vector<16x128xf32>,
    return
  }
  func.func @transform_0(%arg0: i32) -> (i32, i32) {
    %c0_i32 = arith.constant 0 : i32
    %c0_i32_0 = arith.constant 0 : i32
    return %arg0, %c0_i32 : i32, i32
  }
  func.func @transform_1(%arg0: i32) -> (i32, i32) {
    %c0_i32 = arith.constant 0 : i32
    %c0_i32_0 = arith.constant 0 : i32
    %c0_i32_1 = arith.constant 0 : i32
    return %c0_i32, %c0_i32_0 : i32, i32
  }
  func.func @transform_2(%arg0: i32) -> (i32, i32) {
    %c0_i32 = arith.constant 0 : i32
    %c0_i32_0 = arith.constant 0 : i32
    return %arg0, %c0_i32 : i32, i32
  }
}

</mosaic_0001>

<llo_original>
// kernel: tpu_custom_call.1
$region0: #{tpu_custom_call.1}
  #allocation0 [shape = 'u32[]', space=smem, size = 0x4, offset = 0x4, fixed_abs, tag = 'smem constant byte address 0x4 - core index']
  #allocation1 [shape = 'u32[144,128]{1,0:T(1,128)}', space=vmem, size = 0x12000, scoped, tag = 'internal scratch']
  %s0 = inlined_call_operand.hbm [shape: f32[40,128], index: 0, kind: input, shape index: {}]
  %s1 = inlined_call_operand.hbm [shape: f32[128,128], index: 1, kind: input, shape index: {}]
  %s2 = inlined_call_operand.hbm [shape: f32[40,128], index: 2, kind: output, shape index: {}]
  %s3 = sld [smem:[#allocation0]]
  $region49: #{tpu_custom_call.1} parent=0
    _
  %s5 = ssub.s32 1, %s3
  %s6 = scalar_select 0, %s5, %s3
  $region1: #{tpu_custom_call.1} parent=0
    #allocation2 [shape = 'u8[16384]{0}', space=vmem, size = 0x4000, scoped, tag = 'input window, operand 0']
    #allocation3 [shape = 's32[2]{0}', space=sflag, size = 0x8, scoped, tag = 'scoped memory for tpu_custom_call.1']
    #allocation4 [shape = 's32[2]{0}', space=sflag, size = 0x8, scoped, tag = 'scoped memory for tpu_custom_call.1']
    #allocation5 [shape = 'u8[65536]{0}', space=vmem, size = 0x10000, scoped, tag = 'input window, operand 1, single buffered']
    #allocation6 [shape = 's32[1]{0}', space=sflag, size = 0x4, scoped, tag = 'scoped memory for tpu_custom_call.1']
    #allocation7 [shape = 'u8[16384]{0}', space=vmem, size = 0x4000, scoped, tag = 'output window, operand 0']
    %7 = vsyncpa [#allocation3], 0
    %s8 = scalar_lea.sflag [#allocation3], 1
    %9 = vsyncpa %s8, 0
    %10 = vsyncpa [#allocation6], 0
    %11 = vsyncpa [#allocation4], 0
    %s12 = scalar_lea.sflag [#allocation4], 1
    %13 = vsyncpa %s12, 0
    loop: start=0, step=1, limit=5
    $region2: #{tpu_custom_call.1} parent=1 // loop_pre_header
      _
    $region3: #{tpu_custom_call.1} parent=1 // loop_header
      %s15 = sphi 0, %s19
      %p16 = scmp.ge.s32.totalorder %s15, 5
      %s25 = sphi 0, %s27
      %s28 = sphi 0, %s25
      %s29 = sphi 0, %s28
      %s45 = sphi 0, %s29
      %s49 = sphi 0, %s49
      %s51 = sphi 0, %s49
      %s52 = sphi 0, %s51
      %s66 = sphi 0, %s52
      %s72 = sphi 0, %s74
      %s75 = sphi 0, %s72
      %s76 = sphi 0, %s75
      %s92 = sphi 0, %s76
    $region4: #{tpu_custom_call.1} parent=1 // loop_header_branch
      %18 = sbr.rel (%p16) target = $region8
    $region5: #{tpu_custom_call.1} parent=1 // loop_body
      %s20 = ssub.s32 %s15, 1
      %s21 = ssub.s32 %s15, 2
      %s22 = sadd.s32 %s15, 1
      %s23 = ssub.s32 %s15, %s22
      %p24 = scmp.eq.s32.totalorder %s23, 0
      %s26 = sadd.s32 %s25, 1
      %s27 = scalar_select %p24, %s25, %s26
      %p30 = pneg %p24
      %p31 = scmp.eq.s32.totalorder %s15, 2
      %p32 = por %p30, %p31
      %p33 = scmp.ne.s32.totalorder %s25, %s28
      %p34 = scmp.eq.s32.totalorder %s15, 0
      %p35 = por %p33, %p34
      %p36 = scmp.ne.s32.totalorder %s25, %s28
      %p37 = scmp.eq.s32.totalorder %s20, 2
      %p38 = por %p36, %p37
      %p39 = scmp.ne.s32.totalorder %s28, %s29
      %p40 = scmp.eq.s32.totalorder %s20, 0
      %p41 = por %p39, %p40
      %p42 = scmp.ne.s32.totalorder %s28, %s29
      %p43 = scmp.eq.s32.totalorder %s21, 2
      %p44 = por %p42, %p43
      %p46 = scmp.ne.s32.totalorder %s29, %s45
      %p47 = scmp.eq.s32.totalorder %s21, 0
      %p48 = por %p46, %p47
      %s50 = sadd.s32 %s49, 1
      %p53 = scmp.eq.s32.totalorder %s15, 2
      %p54 = scmp.ne.s32.totalorder %s49, %s51
      %p55 = scmp.eq.s32.totalorder %s15, 0
      %p56 = por %p54, %p55
      %p57 = scmp.ne.s32.totalorder %s49, %s51
      %p58 = scmp.eq.s32.totalorder %s20, 2
      %p59 = por %p57, %p58
      %p60 = scmp.ne.s32.totalorder %s51, %s52
      %p61 = scmp.eq.s32.totalorder %s20, 0
      %p62 = por %p60, %p61
      %p63 = scmp.ne.s32.totalorder %s51, %s52
      %p64 = scmp.eq.s32.totalorder %s21, 2
      %p65 = por %p63, %p64
      %p67 = scmp.ne.s32.totalorder %s52, %s66
      %p68 = scmp.eq.s32.totalorder %s21, 0
      %p69 = por %p67, %p68
      %s70 = ssub.s32 %s15, %s22
      %p71 = scmp.eq.s32.totalorder %s70, 0
      %s73 = sadd.s32 %s72, 1
      %s74 = scalar_select %p71, %s72, %s73
      %p77 = pneg %p71
      %p78 = scmp.eq.s32.totalorder %s15, 2
      %p79 = por %p77, %p78
      %p80 = scmp.ne.s32.totalorder %s72, %s75
      %p81 = scmp.eq.s32.totalorder %s15, 0
      %p82 = por %p80, %p81
      %p83 = scmp.ne.s32.totalorder %s72, %s75
      %p84 = scmp.eq.s32.totalorder %s20, 2
      %p85 = por %p83, %p84
      %p86 = scmp.ne.s32.totalorder %s75, %s76
      %p87 = scmp.eq.s32.totalorder %s20, 0
      %p88 = por %p86, %p87
      %p89 = scmp.ne.s32.totalorder %s75, %s76
      %p90 = scmp.eq.s32.totalorder %s21, 2
      %p91 = por %p89, %p90
      %p93 = scmp.ne.s32.totalorder %s76, %s92
      %p94 = scmp.eq.s32.totalorder %s21, 0
      %p95 = por %p93, %p94
      %p96 = scmp.le.s32.totalorder 1, %s15
      %p97 = scmp.lt.s32.totalorder %s15, 4
      %p98 = pnand %p96, %p97
      %p99 = pneg %p98
      // Predicated region
      $region9: #{tpu_custom_call.1} parent=5 // pred_check
        _
      $region10: #{tpu_custom_call.1} parent=5 // pred_check_branch
        %101 = sbr.rel (%p98) target = $region12
      $region11: #{tpu_custom_call.1} parent=5 // pred_region
        %s102 = ssub.s32 %s15, 1
        // Predicated region
        $region13: #{tpu_custom_call.1} parent=11 // pred_check
          %p103 = pneg %p62
        $region14: #{tpu_custom_call.1} parent=11 // pred_check_branch
          %105 = sbr.rel (%p103) target = $region16
        $region15: #{tpu_custom_call.1} parent=11 // pred_region
          %s107 = ssub.s32 2048, 2048
          %108 = vsyncadd [#allocation6], %s107
          %s109 = sshll.u32 [#allocation5], 4
          %s110 = int_to_ptr.vmem [resolvable:$true] %s109
          %115 = dma.hbm_to_vmem [thread:$0]  %s1, 2048, %s110, [#allocation6], 128, 128, 8
        $region16: #{tpu_custom_call.1} parent=11 // pred_fallthru
          _
      $region12: #{tpu_custom_call.1} parent=5 // pred_fallthru
        _
      %p116 = scmp.lt.s32.totalorder %s15, 3
      // Predicated region
      $region17: #{tpu_custom_call.1} parent=5 // pred_check
        %p117 = pneg %p116
      $region18: #{tpu_custom_call.1} parent=5 // pred_check_branch
        %119 = sbr.rel (%p117) target = $region20
      $region19: #{tpu_custom_call.1} parent=5 // pred_region
        // Predicated region
        $region21: #{tpu_custom_call.1} parent=19 // pred_check
          %p120 = pneg %p35
        $region22: #{tpu_custom_call.1} parent=19 // pred_check_branch
          %122 = sbr.rel (%p120) target = $region24
        $region23: #{tpu_custom_call.1} parent=19 // pred_region
          %s123 = sand.u32 %s25, 1
          %s124 = scalar_lea.sflag [#allocation3], %s123
          %s125 = sand.u32 %s25, 1
          %s126 = smul.addr %s125, 16
          %s127 = scalar_lea.vmem [#allocation2], %s126
          %s128 = smul.u32 2, %s15
          %s129 = ssub.s32 5, %s128
          %p130 = scmp.lt.s32.totalorder %s129, 2
          %s131 = scalar_select %p130, %s129, 2
          %s132 = smul.u32 128, %s131
          %s134 = ssub.s32 256, %s132
          %135 = vsyncadd %s124, %s134
          %p136 = scmp.ne.s32.totalorder 0, %s132
          %s137 = smul.addr %s128, 128
          %s138 = scalar_lea.hbm %s0, %s137
          %s139 = smul.u32 8, %s131
          %s140 = sshll.u32 %s127, 4
          %s141 = int_to_ptr.vmem [resolvable:$true] %s140
          %s142 = sshll.u32 %s139, 4
          %146 = dma.hbm_to_vmem [thread:$0]  (%p136), %s138, %s142, %s141, %s124, 128, 128, 8
        $region24: #{tpu_custom_call.1} parent=19 // pred_fallthru
          _
      $region20: #{tpu_custom_call.1} parent=5 // pred_fallthru
        _
      %p147 = scmp.le.s32.totalorder 1, %s15
      %p148 = scmp.lt.s32.totalorder %s15, 4
      %p149 = pnand %p147, %p148
      %p150 = pneg %p149
      // Predicated region
      $region25: #{tpu_custom_call.1} parent=5 // pred_check
        _
      $region26: #{tpu_custom_call.1} parent=5 // pred_check_branch
        %152 = sbr.rel (%p149) target = $region28
      $region27: #{tpu_custom_call.1} parent=5 // pred_region
        %s153 = ssub.s32 %s15, 1
        %s154 = sand.u32 %s28, 1
        %s155 = scalar_lea.sflag [#allocation3], %s154
        %s156 = sand.u32 %s28, 1
        %s157 = smul.addr %s156, 16
        %s158 = scalar_lea.vmem [#allocation2], %s157
        // Predicated region
        $region29: #{tpu_custom_call.1} parent=27 // pred_check
          %p159 = pneg %p41
        $region30: #{tpu_custom_call.1} parent=27 // pred_check_branch
          %161 = sbr.rel (%p159) target = $region32
        $region31: #{tpu_custom_call.1} parent=27 // pred_region
          %162 = dma.done %s155, 256
        $region32: #{tpu_custom_call.1} parent=27 // pred_fallthru
          _
        // Predicated region
        $region33: #{tpu_custom_call.1} parent=27 // pred_check
          %p163 = pneg %p62
        $region34: #{tpu_custom_call.1} parent=27 // pred_check_branch
          %165 = sbr.rel (%p163) target = $region36
        $region35: #{tpu_custom_call.1} parent=27 // pred_region
          %166 = dma.done [#allocation6], 2048
        $region36: #{tpu_custom_call.1} parent=27 // pred_fallthru
          _
        %s167 = sand.u32 %s28, 1
        %s168 = scalar_lea.sflag [#allocation3], %s167
        %s169 = sand.u32 %s28, 1
        %s170 = smul.addr %s169, 16
        %s171 = scalar_lea.vmem [#allocation2], %s170
        %p172 = pneg %p41
        %p173 = pneg %p38
        %p174 = pneg %p62
        %p175 = pneg %p59
        %p176 = pneg %p88
        %p177 = pneg %p85
        %s178 = sand.u32 %s75, 1
        %s179 = scalar_lea.sflag [#allocation4], %s178
        %s180 = sand.u32 %s75, 1
        %s181 = smul.addr %s180, 16
        %s182 = scalar_lea.vmem [#allocation7], %s181
        %s183 = smul.u32 2, %s20
        %s184 = ssub.s32 5, %s183
        %p185 = scmp.lt.s32.totalorder %s184, 2
        %s186 = scalar_select %p185, %s184, 2
        %s187 = smul.u32 128, %s186
        %s188 = smul.u32 2, %s20
        %s189 = ssub.s32 5, %s188
        %p190 = scmp.lt.s32.totalorder %s189, 2
        %s191 = scalar_select %p190, %s189, 2
        %s192 = smul.u32 128, %s191
        %v193 = vld [vmem:[%s158] sm:$0xff]
        %v194 = vld [vmem:[%s158 + $0x8] sm:$0xff]
        %v195 = vld [vmem:[#allocation5] sm:$0xff]
        %v196 = vld [vmem:[#allocation5 + $0x8] sm:$0xff]
        %v197 = vld [vmem:[#allocation5 + $0x10] sm:$0xff]
        %v198 = vld [vmem:[#allocation5 + $0x18] sm:$0xff]
        %v199 = vld [vmem:[#allocation5 + $0x20] sm:$0xff]
        %v200 = vld [vmem:[#allocation5 + $0x28] sm:$0xff]
        %v201 = vld [vmem:[#allocation5 + $0x30] sm:$0xff]
        %v202 = vld [vmem:[#allocation5 + $0x38] sm:$0xff]
        %v203 = vld [vmem:[#allocation5 + $0x40] sm:$0xff]
        %v204 = vld [vmem:[#allocation5 + $0x48] sm:$0xff]
        %v205 = vld [vmem:[#allocation5 + $0x50] sm:$0xff]
        %v206 = vld [vmem:[#allocation5 + $0x58] sm:$0xff]
        %v207 = vld [vmem:[#allocation5 + $0x60] sm:$0xff]
        %v208 = vld [vmem:[#allocation5 + $0x68] sm:$0xff]
        %v209 = vld [vmem:[#allocation5 + $0x70] sm:$0xff]
        %v210 = vld [vmem:[#allocation5 + $0x78] sm:$0xff]
        %211 = vmatprep.subr.mxu0 0.0
        %212 = vmatpush1.msra.mxu0 %v195
        %213 = vmatprep.subr.mxu0 0.0
        %214 = vmatpush1.msra.mxu0 %v196
        %215 = vmatprep.subr.mxu0 0.0
        %216 = vmatpush1.msra.mxu0 %v197
        %217 = vmatprep.subr.mxu0 0.0
        %218 = vmatpush1.msra.mxu0 %v198
        %219 = vmatprep.subr.mxu0 0.0
        %220 = vmatpush1.msra.mxu0 %v199
        %221 = vmatprep.subr.mxu0 0.0
        %222 = vmatpush1.msra.mxu0 %v200
        %223 = vmatprep.subr.mxu0 0.0
        %224 = vmatpush1.msra.mxu0 %v201
        %225 = vmatprep.subr.mxu0 0.0
        %226 = vmatpush1.msra.mxu0 %v202
        %227 = vmatprep.subr.mxu0 0.0
        %228 = vmatpush1.msra.mxu0 %v203
        %229 = vmatprep.subr.mxu0 0.0
        %230 = vmatpush1.msra.mxu0 %v204
        %231 = vmatprep.subr.mxu0 0.0
        %232 = vmatpush1.msra.mxu0 %v205
        %233 = vmatprep.subr.mxu0 0.0
        %234 = vmatpush1.msra.mxu0 %v206
        %235 = vmatprep.subr.mxu0 0.0
        %236 = vmatpush1.msra.mxu0 %v207
        %237 = vmatprep.subr.mxu0 0.0
        %238 = vmatpush1.msra.mxu0 %v208
        %239 = vmatprep.subr.mxu0 0.0
        %240 = vmatpush1.msra.mxu0 %v209
        %241 = vmatprep.subr.mxu0 0.0
        %242 = vmatpush1.msra.mxu0 %v210
        %243 = vmatprep.subr.mxu0 0.0
        %244 = vmatpush1.msra.mxu0 0.0
        %245 = vmatprep.subr.mxu0 0.0
        %246 = vmatpush1.msra.mxu0 0.0
        %247 = vmatprep.subr.mxu0 0.0
        %248 = vmatpush1.msra.mxu0 0.0
        %249 = vmatprep.subr.mxu0 0.0
        %250 = vmatpush1.msra.mxu0 0.0
        %251 = vmatprep.subr.mxu0 0.0
        %252 = vmatpush1.msra.mxu0 0.0
        %253 = vmatprep.subr.mxu0 0.0
        %254 = vmatpush1.msra.mxu0 0.0
        %255 = vmatprep.subr.mxu0 0.0
        %256 = vmatpush1.msra.mxu0 0.0
        %257 = vmatprep.subr.mxu0 0.0
        %258 = vmatpush1.msra.mxu0 0.0
        %259 = vmatprep.subr.mxu0 0.0
        %260 = vmatpush1.msra.mxu0 0.0
        %261 = vmatprep.subr.mxu0 0.0
        %262 = vmatpush1.msra.mxu0 0.0
        %263 = vmatprep.subr.mxu0 0.0
        %264 = vmatpush1.msra.mxu0 0.0
        %265 = vmatprep.subr.mxu0 0.0
        %266 = vmatpush1.msra.mxu0 0.0
        %267 = vmatprep.subr.mxu0 0.0
        %268 = vmatpush1.msra.mxu0 0.0
        %269 = vmatprep.subr.mxu0 0.0
        %270 = vmatpush1.msra.mxu0 0.0
        %271 = vmatprep.subr.mxu0 0.0
        %272 = vmatpush1.msra.mxu0 0.0
        %273 = vmatprep.subr.mxu0 0.0
        %274 = vmatpush1.msra.mxu0 0.0
        %275 = vmatprep.mubr.f32.mxu0 0.0
        %276 = vmatmul.mubr.f32.gmra.mrb[0].mxu0 %v193
        %v277 = vpop.f32.mrb[0].mxu0
        %v278 = vadd.f32 3.0, %v277
        %v279 = vpop.f32.mrb[0].mxu0
        %280 = vmatprep.mubr.f32.mxu0 0.0
        %281 = vmatmul.mubr.f32.gmra.mrb[0].mxu0 %v194
        %v282 = vpop.f32.mrb[0].mxu0
        %v283 = vadd.f32 3.0, %v282
        %v284 = vpop.f32.mrb[0].mxu0
        %285 = vdwg.mxu0
        %v286 = vmax.f32 %v278, 0.0
        %v287 = vmax.f32 %v283, 0.0
        %v288 = vmin.f32 %v286, 6.0
        %v289 = vmin.f32 %v287, 6.0
        %v290 = vmul.f32 %v288, 0.33333334
        %v291 = vmul.f32 %v289, 0.33333334
        %v292 = vmul.f32 %v193, %v290
        %v293 = vmul.f32 %v194, %v291
        %294 = vst [vmem:[%s182] sm:$0xff] %v292
        %295 = vst [vmem:[%s182 + $0x8] sm:$0xff] %v293
        %s296 = sand.u32 %s75, 1
        %s297 = scalar_lea.sflag [#allocation4], %s296
        %s298 = sand.u32 %s75, 1
        %s299 = smul.addr %s298, 16
        %s300 = scalar_lea.vmem [#allocation7], %s299
        // Predicated region
        $region37: #{tpu_custom_call.1} parent=27 // pred_check
          %p301 = pneg %p85
        $region38: #{tpu_custom_call.1} parent=27 // pred_check_branch
          %303 = sbr.rel (%p301) target = $region40
        $region39: #{tpu_custom_call.1} parent=27 // pred_region
          %s304 = smul.u32 2, %s20
          %s305 = ssub.s32 5, %s304
          %p306 = scmp.lt.s32.totalorder %s305, 2
          %s307 = scalar_select %p306, %s305, 2
          %s308 = smul.u32 128, %s307
          %s310 = ssub.s32 256, %s308
          %311 = vsyncadd %s297, %s310
          %p312 = scmp.ne.s32.totalorder 0, %s308
          %s313 = smul.addr %s304, 128
          %s314 = scalar_lea.hbm %s2, %s313
          %s315 = smul.u32 8, %s307
          %s316 = sshll.u32 %s300, 4
          %s317 = int_to_ptr.vmem [resolvable:$true] %s316
          %s318 = sshll.u32 %s315, 4
          %322 = dma.vmem_to_hbm [thread:$0]  (%p312), %s317, %s318, %s314, %s297, 128, 128, 8
        $region40: #{tpu_custom_call.1} parent=27 // pred_fallthru
          _
      $region28: #{tpu_custom_call.1} parent=5 // pred_fallthru
        _
      %p323 = scmp.le.s32.totalorder 2, %s15
      // Predicated region
      $region41: #{tpu_custom_call.1} parent=5 // pred_check
        %p324 = pneg %p323
      $region42: #{tpu_custom_call.1} parent=5 // pred_check_branch
        %326 = sbr.rel (%p324) target = $region44
      $region43: #{tpu_custom_call.1} parent=5 // pred_region
        %s327 = ssub.s32 %s15, 2
        // Predicated region
        $region45: #{tpu_custom_call.1} parent=43 // pred_check
          %p328 = pneg %p91
        $region46: #{tpu_custom_call.1} parent=43 // pred_check_branch
          %330 = sbr.rel (%p328) target = $region48
        $region47: #{tpu_custom_call.1} parent=43 // pred_region
          %s331 = sand.u32 %s76, 1
          %s332 = scalar_lea.sflag [#allocation4], %s331
          %s333 = sand.u32 %s76, 1
          %s334 = smul.addr %s333, 16
          %s335 = scalar_lea.vmem [#allocation7], %s334
          %336 = dma.done %s332, 256
        $region48: #{tpu_custom_call.1} parent=43 // pred_fallthru
          _
      $region44: #{tpu_custom_call.1} parent=5 // pred_fallthru
        _
    $region6: #{tpu_custom_call.1} parent=1 // loop_footer
      %s19 = sadd.s32 1, %s15
    $region7: #{tpu_custom_call.1} parent=1 // loop_footer_branch
      %14 = sbr.rel target = $region3
    $region8: #{tpu_custom_call.1} parent=1 // loop_exit
      _
    %337 = vsyncpa [#allocation3], 1
    %s338 = scalar_lea.sflag [#allocation3], 1
    %339 = vsyncpa %s338, 1
    %340 = vsyncpa [#allocation6], 1
    %341 = vsyncpa [#allocation4], 1
    %s342 = scalar_lea.sflag [#allocation4], 1
    %343 = vsyncpa %s342, 1

</llo_original>
